<compile_context>
chip_gen: v6e
topology: v6e:2x2x1
jax: 0.10.0
libtpu: 0.0.40
codegen_flags: <defaults>
</compile_context>

<pallas_src>
import functools
import math

import jax
import jax.numpy as jnp
from jax.experimental import pallas as pl
from jax.experimental.pallas import tpu as pltpu

EPS = 1e-5


# ----------------------------------------------------------------------------
# small in-kernel helpers for the packed (small-C) layout
# ----------------------------------------------------------------------------
def _group_reduce_last(a, k):
    """(bb, 1, k*c) -> (bb, 1, c): sum the k packed time-groups (tiny)."""
    if k == 1:
        return a
    c = a.shape[-1] // k
    out = a[:, :, 0:c]
    for g in range(1, k):
        out = out + a[:, :, g * c:(g + 1) * c]
    return out


def _tile_last(a, k):
    """(bb, 1, c) -> (bb, 1, k*c): repeat the channel vector k times (tiny)."""
    if k == 1:
        return a
    return jnp.concatenate([a] * k, axis=-1)


# ----------------------------------------------------------------------------
# kernels
# ----------------------------------------------------------------------------
def _norm_fused_kernel(x_ref, w_ref, b_ref, y_ref, mean_ref, std_ref, *, k, n_time):
    """Fused stats + normalize; the whole time axis is resident in the block.

    x_ref: (bb, T//k, k*cg), w_ref/b_ref: (1, k*cg), mean_ref/std_ref: (bb, 1, cg).
    Two-pass variance is kept for precision (matches PyTorch within 1e-5).
    """
    x = x_ref[...].astype(jnp.float32)
    inv_n = 1.0 / n_time

    s = jnp.sum(x, axis=1, keepdims=True)                 # (bb, 1, k*cg)
    mean = _group_reduce_last(s, k) * inv_n               # (bb, 1, cg)
    mean_kc = _tile_last(mean, k)                         # (bb, 1, k*cg)

    d = x - mean_kc
    sq = jnp.sum(d * d, axis=1, keepdims=True)
    var = _group_reduce_last(sq, k) * inv_n
    std = jnp.sqrt(var + EPS)
    inv_std = 1.0 / std                                   # exact, tiny vector

    w = w_ref[...].astype(jnp.float32)[None]              # (1, 1, k*cg)
    b = b_ref[...].astype(jnp.float32)[None]
    scale = w * _tile_last(inv_std, k)                    # (bb, 1, k*cg)
    shift = b - mean_kc * scale
    y_ref[...] = (x * scale + shift).astype(y_ref.dtype)  # single FMA pass
    mean_ref[...] = mean.astype(mean_ref.dtype)
    std_ref[...] = std.astype(std_ref.dtype)


def _stats_kernel(x_ref, mean_ref, std_ref, *, k, n_time):
    """Long-T path, pass 1: accumulate sum / sum-of-squares over the T grid
    axis (last, 'arbitrary') directly in the resident output blocks.

    Single-pass E[x^2]-mean^2 variance: a second (x-mean)^2 sweep would need a
    full extra HBM read of x, so the small cancellation risk is accepted here.
    """
    t = pl.program_id(2)

    @pl.when(t == 0)
    def _():
        mean_ref[...] = jnp.zeros_like(mean_ref)
        std_ref[...] = jnp.zeros_like(std_ref)

    x = x_ref[...].astype(jnp.float32)
    mean_ref[...] += _group_reduce_last(jnp.sum(x, axis=1, keepdims=True), k)
    std_ref[...] += _group_reduce_last(jnp.sum(x * x, axis=1, keepdims=True), k)

    @pl.when(t == pl.num_programs(2) - 1)
    def _():
        inv_n = 1.0 / n_time
        m = mean_ref[...] * inv_n
        var = jnp.maximum(std_ref[...] * inv_n - m * m, 0.0)
        mean_ref[...] = m
        std_ref[...] = jnp.sqrt(var + EPS)


def _norm_apply_kernel(x_ref, mean_ref, std_ref, w_ref, b_ref, y_ref, *, k):
    """Long-T path, pass 2: y = (x - mean)/std * w + b == x*scale + shift."""
    x = x_ref[...].astype(jnp.float32)
    mean = _tile_last(mean_ref[...].astype(jnp.float32), k)
    inv_std = _tile_last(1.0 / std_ref[...].astype(jnp.float32), k)
    w = w_ref[...].astype(jnp.float32)[None]
    b = b_ref[...].astype(jnp.float32)[None]
    scale = w * inv_std
    shift = b - mean * scale
    y_ref[...] = (x * scale + shift).astype(y_ref.dtype)


def _denorm_kernel(x_ref, mean_ref, std_ref, w_ref, b_ref, y_ref, *, k):
    """((x - b)/(w + eps^2)) * std + mean == x*scale + shift."""
    x = x_ref[...].astype(jnp.float32)
    mean = _tile_last(mean_ref[...].astype(jnp.float32), k)
    std = _tile_last(std_ref[...].astype(jnp.float32), k)
    w = w_ref[...].astype(jnp.float32)[None]
    b = b_ref[...].astype(jnp.float32)[None]
    scale = std / (w + EPS * EPS)
    shift = mean - b * scale
    y_ref[...] = (x * scale + shift).astype(y_ref.dtype)


# ----------------------------------------------------------------------------
# tiling heuristics
# ----------------------------------------------------------------------------
def _vmem_config(budget_override=None):
    """(per-x-block byte budget, vmem_limit_bytes), TPU-generation aware.

    Working set ~= 2x(in block) + 2x(out block) + f32 temporaries ~= 6 blocks,
    so budget is kept well under vmem_limit/6.
    """
    try:
        cap = pltpu.get_tpu_info().vmem_capacity_bytes
    except Exception:
        cap = 64 << 20                       # be v7x-safe if the query fails
    if cap >= (96 << 20):                    # v5e / v6e: 128 MiB physical
        budget, limit = 8 << 20, 96 << 20
    else:                                    # v7x: 64 MiB per TensorCore
        budget, limit = 4 << 20, 48 << 20
    if budget_override is not None:
        budget = int(budget_override)
    return budget, limit


def _choose_pack(T, C):
    """k such that (B, T, C) -> (B, T//k, k*C) gives a lane-dense last dim."""
    if C >= 128:
        return 1
    k0 = 128 // math.gcd(C, 128)             # smallest k with (k*C) % 128 == 0
    best, k = 1, k0
    while k <= T and k * C <= 1024:
        if T % k == 0:
            best = k
        k += k0
    return best


def _largest_divisor_leq(n, cap):
    cap = max(1, min(n, int(cap)))
    for d in range(cap, 0, -1):
        if n % d == 0:
            return d
    return 1


def _choose_tiles(B, T, C, itemsize, budget_bytes, allow_channel_split):
    """Pick (bb, tt, tc) block dims for an x array of shape (B, T, C)."""
    slab = T * C * itemsize
    if slab <= budget_bytes:
        # Full contiguous (T, C) slab per batch row; grow bb to fill the
        # budget, but keep >=2 grid steps so both v7x TensorCores get work.
        bb = _largest_divisor_leq(B, budget_bytes // slab)
        if bb == B and B > 1:
            bb = _largest_divisor_leq(B, B // 2)
        return bb, T, C

    if allow_channel_split and C % 128 == 0:
        # Channel split keeps the fused full-T pass (one HBM read of x).
        max_tc = (budget_bytes // (T * itemsize)) // 128 * 128
        tc = 0
        for cand in range(min(max_tc, C), 0, -128):
            if C % cand == 0:
                tc = cand
                break
        if tc >= 128:
            return 1, T, tc

    # Long-T fallback: tile the time axis.
    tc = C
    if allow_channel_split and C % 128 == 0 and 8 * C * itemsize > budget_bytes:
        tc = 128
    max_rows = max(8, (budget_bytes // (tc * itemsize)) // 8 * 8)
    start = min(max_rows, (T // 8) * 8)
    tt = 0
    for cand in range(start, 7, -8):
        if T % cand == 0:
            tt = cand
            break
    if tt == 0:
        # TODO(synk): T with no usable multiple-of-8 divisor falls back to the
        # full time axis; a ragged/masked last block would remove this hole.
        tt = T
    return 1, tt, tc


# ----------------------------------------------------------------------------
# wrappers
# ----------------------------------------------------------------------------
def revin_norm(x, weight, bias, *, budget_bytes=None):
    """mode='norm': returns (normalized_x, mean, std).  mean/std are f32 (B,1,C)."""
    B, T, C = x.shape
    budget, vmem_limit = _vmem_config(budget_bytes)

    k = _choose_pack(T, C)
    Tk, KC = T // k, k * C
    bb, tt, tc = _choose_tiles(B, Tk, KC, x.dtype.itemsize, budget,
                               allow_channel_split=(k == 1))
    cg = tc // k                              # channels per stats block
    nb, nc = B // bb, KC // tc

    xk = x.reshape(B, Tk, KC)                 # free view (T, C adjacent)
    w2 = jnp.tile(weight.astype(jnp.float32).reshape(1, C), (1, k))
    b2 = jnp.tile(bias.astype(jnp.float32).reshape(1, C), (1, k))

    if tt == Tk:
        # Fast path: whole time axis resident per block -> fused kernel.
        y, mean, std = pl.pallas_call(
            functools.partial(_norm_fused_kernel, k=k, n_time=T),
            out_shape=(
                jax.ShapeDtypeStruct((B, Tk, KC), x.dtype),
                jax.ShapeDtypeStruct((B, 1, C), jnp.float32),
                jax.ShapeDtypeStruct((B, 1, C), jnp.float32),
            ),
            grid_spec=pltpu.PrefetchScalarGridSpec(
                num_scalar_prefetch=0,
                grid=(nc, nb),                # channel slow -> w/b not re-DMA'd
                in_specs=[
                    pl.BlockSpec((bb, Tk, tc), lambda j, i: (i, 0, j)),
                    pl.BlockSpec((1, tc), lambda j, i: (0, j)),
                    pl.BlockSpec((1, tc), lambda j, i: (0, j)),
                ],
                out_specs=[
                    pl.BlockSpec((bb, Tk, tc), lambda j, i: (i, 0, j)),
                    pl.BlockSpec((bb, 1, cg), lambda j, i: (i, 0, j)),
                    pl.BlockSpec((bb, 1, cg), lambda j, i: (i, 0, j)),
                ],
            ),
            compiler_params=pltpu.CompilerParams(
                dimension_semantics=("parallel", "parallel"),
                vmem_limit_bytes=vmem_limit,
            ),
        )(xk, w2, b2)
        return y.reshape(B, T, C), mean, std

    # Long-T path: pass 1 (stats reduction over T), pass 2 (normalize).
    nt = Tk // tt
    mean, std = pl.pallas_call(
        functools.partial(_stats_kernel, k=k, n_time=T),
        out_shape=(
            jax.ShapeDtypeStruct((B, 1, C), jnp.float32),
            jax.ShapeDtypeStruct((B, 1, C), jnp.float32),
        ),
        grid_spec=pltpu.PrefetchScalarGridSpec(
            num_scalar_prefetch=0,
            grid=(nc, nb, nt),
            in_specs=[pl.BlockSpec((bb, tt, tc), lambda j, i, t: (i, t, j))],
            out_specs=[
                pl.BlockSpec((bb, 1, cg), lambda j, i, t: (i, 0, j)),
                pl.BlockSpec((bb, 1, cg), lambda j, i, t: (i, 0, j)),
            ],
        ),
        compiler_params=pltpu.CompilerParams(
            dimension_semantics=("parallel", "parallel", "arbitrary"),
            vmem_limit_bytes=vmem_limit,
        ),
    )(xk)

    y = pl.pallas_call(
        functools.partial(_norm_apply_kernel, k=k),
        out_shape=jax.ShapeDtypeStruct((B, Tk, KC), x.dtype),
        grid_spec=pltpu.PrefetchScalarGridSpec(
            num_scalar_prefetch=0,
            grid=(nc, nb, nt),
            in_specs=[
                pl.BlockSpec((bb, tt, tc), lambda j, i, t: (i, t, j)),
                pl.BlockSpec((bb, 1, cg), lambda j, i, t: (i, 0, j)),
                pl.BlockSpec((bb, 1, cg), lambda j, i, t: (i, 0, j)),
                pl.BlockSpec((1, tc), lambda j, i, t: (0, j)),
                pl.BlockSpec((1, tc), lambda j, i, t: (0, j)),
            ],
            out_specs=pl.BlockSpec((bb, tt, tc), lambda j, i, t: (i, t, j)),
        ),
        compiler_params=pltpu.CompilerParams(
            dimension_semantics=("parallel", "parallel", "parallel"),
            vmem_limit_bytes=vmem_limit,
        ),
    )(xk, mean, std, w2, b2)
    return y.reshape(B, T, C), mean, std


def revin_denorm(x, mean, std, weight, bias, *, budget_bytes=None):
    """mode='denorm': uses stats computed during 'norm'."""
    B, T, C = x.shape
    budget, vmem_limit = _vmem_config(budget_bytes)

    k = _choose_pack(T, C)
    Tk, KC = T // k, k * C
    bb, tt, tc = _choose_tiles(B, Tk, KC, x.dtype.itemsize, budget,
                               allow_channel_split=(k == 1))
    cg = tc // k
    nb, nc, nt = B // bb, KC // tc, Tk // tt

    xk = x.reshape(B, Tk, KC)
    w2 = jnp.tile(weight.astype(jnp.float32).reshape(1, C), (1, k))
    b2 = jnp.tile(bias.astype(jnp.float32).reshape(1, C), (1, k))
    mean = mean.reshape(B, 1, C)
    std = std.reshape(B, 1, C)

    y = pl.pallas_call(
        functools.partial(_denorm_kernel, k=k),
        out_shape=jax.ShapeDtypeStruct((B, Tk, KC), x.dtype),
        grid_spec=pltpu.PrefetchScalarGridSpec(
            num_scalar_prefetch=0,
            grid=(nc, nb, nt),
            in_specs=[
                pl.BlockSpec((bb, tt, tc), lambda j, i, t: (i, t, j)),
                pl.BlockSpec((bb, 1, cg), lambda j, i, t: (i, 0, j)),
                pl.BlockSpec((bb, 1, cg), lambda j, i, t: (i, 0, j)),
                pl.BlockSpec((1, tc), lambda j, i, t: (0, j)),
                pl.BlockSpec((1, tc), lambda j, i, t: (0, j)),
            ],
            out_specs=pl.BlockSpec((bb, tt, tc), lambda j, i, t: (i, t, j)),
        ),
        compiler_params=pltpu.CompilerParams(
            dimension_semantics=("parallel", "parallel", "parallel"),
            vmem_limit_bytes=vmem_limit,
        ),
    )(xk, mean, std, w2, b2)
    return y.reshape(B, T, C)


# ----------------------------------------------------------------------------
# pure-JAX reference (mirrors the PyTorch module)
# ----------------------------------------------------------------------------
def _reference_norm(x, weight, bias):
    mean = jnp.mean(x, axis=1, keepdims=True)
    std = jnp.sqrt(jnp.var(x, axis=1, keepdims=True, ddof=0) + EPS)
    y = (x - mean) / std
    return y * weight + bias, mean, std


def _reference_denorm(x, mean, std, weight, bias):
    x = (x - bias) / (weight + EPS * EPS)
    return x * std + mean


def _check_case(key, B, T, C, budget_bytes=None):
    x = jax.random.normal(key, (B, T, C), dtype=jnp.float32) * 3.0 + 1.5
    weight = jnp.ones((C,), dtype=jnp.float32)       # nn.Parameter(torch.ones(C))
    bias = jnp.zeros((C,), dtype=jnp.float32)        # nn.Parameter(torch.zeros(C))

    y, mean, std = revin_norm(x, weight, bias, budget_bytes=budget_bytes)
    jax.block_until_ready((y, mean, std))
    x_rec = revin_denorm(y, mean, std, weight, bias, budget_bytes=budget_bytes)
    jax.block_until_ready(x_rec)

    y_ref, mean_ref, std_ref = _reference_norm(x, weight, bias)
    x_rec_ref = _reference_denorm(y_ref, mean_ref, std_ref, weight, bias)

    assert jnp.allclose(y, y_ref, atol=1e-5, rtol=1e-5)
    assert jnp.allclose(mean, mean_ref, atol=1e-5, rtol=1e-5)
    assert jnp.allclose(std, std_ref, atol=1e-5, rtol=1e-5)
    assert jnp.allclose(x_rec, x_rec_ref, atol=1e-5, rtol=1e-5)
    assert jnp.allclose(x_rec, x, atol=1e-4, rtol=1e-4)


if __name__ == "__main__":
    key = jax.random.PRNGKey(0)
    k1, k2, k3, k4 = jax.random.split(key, 4)

    # (a) small shape consistent with the module; exercises the small-C lane
    #     packing path (C=16, k=8 -> last dim 128).
    _check_case(k1, B=2, T=8, C=16)
    # (b) wide-C case: full-C contiguous blocks, no channel split, grid split
    #     over batch so both v7x TensorCores get work.
    _check_case(k2, B=2, T=16, C=1024)
    # (c) tiny budget override forces the channel-split fused path.
    _check_case(k3, B=2, T=256, C=256, budget_bytes=128 * 1024)
    # (d) tinier budget forces the long-T (stats + apply) path.
    _check_case(k4, B=2, T=256, C=256, budget_bytes=64 * 1024)

    print("KERNEL_OK")
</pallas_src>

<mosaic_0001>
module attributes {stable_mosaic.version = 11 : i64} {
  func.func @_norm_fused_kernel(%arg0: i32, %arg1: i32, %arg2: memref<1x1x128xf32, #tpu.memory_space<vmem>>, %arg3: memref<1x128xf32, #tpu.memory_space<vmem>>, %arg4: memref<1x128xf32, #tpu.memory_space<vmem>>, %arg5: memref<1x1x128xf32, #tpu.memory_space<vmem>>, %arg6: memref<1x1x16xf32, #tpu.memory_space<vmem>>, %arg7: memref<1x1x16xf32, #tpu.memory_space<vmem>>) attributes {dimension_semantics = [#tpu.dimension_semantics<parallel>, #tpu.dimension_semantics<parallel>], iteration_bounds = array<i64: 1, 2>, scalar_prefetch = 0 : i64, scratch_operands = 0 : i64, tpu.core_type = #tpu.core_type<tc>, window_params = [{transform_indices = @transform_0, window_bounds = array<i64: 1, 1, 128>}, {transform_indices = @transform_1, window_bounds = array<i64: 1, 128>}, {transform_indices = @transform_2, window_bounds = array<i64: 1, 128>}, {transform_indices = @transform_3, window_bounds = array<i64: 1, 1, 128>}, {transform_indices = @transform_4, window_bounds = array<i64: 1, 1, 16>}, {transform_indices = @transform_5, window_bounds = array<i64: 1, 1, 16>}]} {
    %c0 = arith.constant 0 : index
    %c0_0 = arith.constant 0 : index
    %c0_1 = arith.constant 0 : index
    %0 = vector.load %arg2[%c0, %c0_0, %c0_1] : memref<1x1x128xf32, #tpu.memory_space<vmem>>, vector<1x1x128xf32>
    %cst = arith.constant dense<0.000000e+00> : vector<1x128xf32>
    %1 = vector.multi_reduction <add>, %0, %cst [1] : vector<1x1x128xf32> to vector<1x128xf32>
    %2 = vector.shape_cast %1 : vector<1x128xf32> to vector<1x1x128xf32>
    %3 = vector.extract_strided_slice %2 {offsets = [0, 0, 0], sizes = [1, 1, 16], strides = [1, 1, 1]} : vector<1x1x128xf32> to vector<1x1x16xf32>
    %4 = vector.extract_strided_slice %2 {offsets = [0, 0, 16], sizes = [1, 1, 16], strides = [1, 1, 1]} : vector<1x1x128xf32> to vector<1x1x16xf32>
    %5 = arith.addf %3, %4 : vector<1x1x16xf32>
    %6 = vector.extract_strided_slice %2 {offsets = [0, 0, 32], sizes = [1, 1, 16], strides = [1, 1, 1]} : vector<1x1x128xf32> to vector<1x1x16xf32>
    %7 = arith.addf %5, %6 : vector<1x1x16xf32>
    %8 = vector.extract_strided_slice %2 {offsets = [0, 0, 48], sizes = [1, 1, 16], strides = [1, 1, 1]} : vector<1x1x128xf32> to vector<1x1x16xf32>
    %9 = arith.addf %7, %8 : vector<1x1x16xf32>
    %10 = vector.extract_strided_slice %2 {offsets = [0, 0, 64], sizes = [1, 1, 16], strides = [1, 1, 1]} : vector<1x1x128xf32> to vector<1x1x16xf32>
    %11 = arith.addf %9, %10 : vector<1x1x16xf32>
    %12 = vector.extract_strided_slice %2 {offsets = [0, 0, 80], sizes = [1, 1, 16], strides = [1, 1, 1]} : vector<1x1x128xf32> to vector<1x1x16xf32>
    %13 = arith.addf %11, %12 : vector<1x1x16xf32>
    %14 = vector.extract_strided_slice %2 {offsets = [0, 0, 96], sizes = [1, 1, 16], strides = [1, 1, 1]} : vector<1x1x128xf32> to vector<1x1x16xf32>
    %15 = arith.addf %13, %14 : vector<1x1x16xf32>
    %16 = vector.extract_strided_slice %2 {offsets = [0, 0, 112], sizes = [1, 1, 16], strides = [1, 1, 1]} : vector<1x1x128xf32> to vector<1x1x16xf32>
    %17 = arith.addf %15, %16 : vector<1x1x16xf32>
    %cst_2 = arith.constant 1.250000e-01 : f32
    %18 = vector.broadcast %cst_2 : f32 to vector<1x1x16xf32>
    %19 = arith.mulf %17, %18 : vector<1x1x16xf32>
    %20 = tpu.concatenate %19, %19, %19, %19, %19, %19, %19, %19 in 2 : vector<1x1x16xf32>, vector<1x1x16xf32>, vector<1x1x16xf32>, vector<1x1x16xf32>, vector<1x1x16xf32>, vector<1x1x16xf32>, vector<1x1x16xf32>, vector<1x1x16xf32> -> vector<1x1x128xf32>
    %21 = arith.subf %0, %20 : vector<1x1x128xf32>
    %22 = arith.mulf %21, %21 : vector<1x1x128xf32>
    %cst_3 = arith.constant dense<0.000000e+00> : vector<1x128xf32>
    %23 = vector.multi_reduction <add>, %22, %cst_3 [1] : vector<1x1x128xf32> to vector<1x128xf32>
    %24 = vector.shape_cast %23 : vector<1x128xf32> to vector<1x1x128xf32>
    %25 = vector.extract_strided_slice %24 {offsets = [0, 0, 0], sizes = [1, 1, 16], strides = [1, 1, 1]} : vector<1x1x128xf32> to vector<1x1x16xf32>
    %26 = vector.extract_strided_slice %24 {offsets = [0, 0, 16], sizes = [1, 1, 16], strides = [1, 1, 1]} : vector<1x1x128xf32> to vector<1x1x16xf32>
    %27 = arith.addf %25, %26 : vector<1x1x16xf32>
    %28 = vector.extract_strided_slice %24 {offsets = [0, 0, 32], sizes = [1, 1, 16], strides = [1, 1, 1]} : vector<1x1x128xf32> to vector<1x1x16xf32>
    %29 = arith.addf %27, %28 : vector<1x1x16xf32>
    %30 = vector.extract_strided_slice %24 {offsets = [0, 0, 48], sizes = [1, 1, 16], strides = [1, 1, 1]} : vector<1x1x128xf32> to vector<1x1x16xf32>
    %31 = arith.addf %29, %30 : vector<1x1x16xf32>
    %32 = vector.extract_strided_slice %24 {offsets = [0, 0, 64], sizes = [1, 1, 16], strides = [1, 1, 1]} : vector<1x1x128xf32> to vector<1x1x16xf32>
    %33 = arith.addf %31, %32 : vector<1x1x16xf32>
    %34 = vector.extract_strided_slice %24 {offsets = [0, 0, 80], sizes = [1, 1, 16], strides = [1, 1, 1]} : vector<1x1x128xf32> to vector<1x1x16xf32>
    %35 = arith.addf %33, %34 : vector<1x1x16xf32>
    %36 = vector.extract_strided_slice %24 {offsets = [0, 0, 96], sizes = [1, 1, 16], strides = [1, 1, 1]} : vector<1x1x128xf32> to vector<1x1x16xf32>
    %37 = arith.addf %35, %36 : vector<1x1x16xf32>
    %38 = vector.extract_strided_slice %24 {offsets = [0, 0, 112], sizes = [1, 1, 16], strides = [1, 1, 1]} : vector<1x1x128xf32> to vector<1x1x16xf32>
    %39 = arith.addf %37, %38 : vector<1x1x16xf32>
    %cst_4 = arith.constant 1.250000e-01 : f32
    %40 = vector.broadcast %cst_4 : f32 to vector<1x1x16xf32>
    %41 = arith.mulf %39, %40 : vector<1x1x16xf32>
    %cst_5 = arith.constant 9.99999974E-6 : f32
    %42 = vector.broadcast %cst_5 : f32 to vector<1x1x16xf32>
    %43 = arith.addf %41, %42 : vector<1x1x16xf32>
    %44 = math.sqrt %43 : vector<1x1x16xf32>
    %cst_6 = arith.constant 1.000000e+00 : f32
    %45 = vector.broadcast %cst_6 : f32 to vector<1x1x16xf32>
    %46 = arith.divf %45, %44 : vector<1x1x16xf32>
    %c0_7 = arith.constant 0 : index
    %c0_8 = arith.constant 0 : index
    %47 = vector.load %arg3[%c0_7, %c0_8] : memref<1x128xf32, #tpu.memory_space<vmem>>, vector<1x128xf32>
    %48 = vector.shape_cast %47 : vector<1x128xf32> to vector<1x1x128xf32>
    %c0_9 = arith.constant 0 : index
    %c0_10 = arith.constant 0 : index
    %49 = vector.load %arg4[%c0_9, %c0_10] : memref<1x128xf32, #tpu.memory_space<vmem>>, vector<1x128xf32>
    %50 = vector.shape_cast %49 : vector<1x128xf32> to vector<1x1x128xf32>
    %51 = tpu.concatenate %46, %46, %46, %46, %46, %46, %46, %46 in 2 : vector<1x1x16xf32>, vector<1x1x16xf32>, vector<1x1x16xf32>, vector<1x1x16xf32>, vector<1x1x16xf32>, vector<1x1x16xf32>, vector<1x1x16xf32>, vector<1x1x16xf32> -> vector<1x1x128xf32>
    %52 = arith.mulf %48, %51 : vector<1x1x128xf32>
    %53 = arith.mulf %20, %52 : vector<1x1x128xf32>
    %54 = arith.subf %50, %53 : vector<1x1x128xf32>
    %55 = arith.mulf %0, %52 : vector<1x1x128xf32>
    %56 = arith.addf %55, %54 : vector<1x1x128xf32>
    %c0_11 = arith.constant 0 : index
    %c0_12 = arith.constant 0 : index
    %c0_13 = arith.constant 0 : index
    %57 = vector.load %arg5[%c0_11, %c0_12, %c0_13] : memref<1x1x128xf32, #tpu.memory_space<vmem>>, vector<1x1x128xf32>
    tpu.vector_store %arg5[%c0_11, %c0_12, %c0_13], %56 {strides = array<i32>} : memref<1x1x128xf32, #tpu.memory_space<vmem>>, vector<1x1x128xf32>,
    %c0_14 = arith.constant 0 : index
    %c0_15 = arith.constant 0 : index
    %c0_16 = arith.constant 0 : index
    %58 = vector.load %arg6[%c0_14, %c0_15, %c0_16] : memref<1x1x16xf32, #tpu.memory_space<vmem>>, vector<1x1x16xf32>
    tpu.vector_store %arg6[%c0_14, %c0_15, %c0_16], %19 {strides = array<i32>} : memref<1x1x16xf32, #tpu.memory_space<vmem>>, vector<1x1x16xf32>,
    %c0_17 = arith.constant 0 : index
    %c0_18 = arith.constant 0 : index
    %c0_19 = arith.constant 0 : index
    %59 = vector.load %arg7[%c0_17, %c0_18, %c0_19] : memref<1x1x16xf32, #tpu.memory_space<vmem>>, vector<1x1x16xf32>
    tpu.vector_store %arg7[%c0_17, %c0_18, %c0_19], %44 {strides = array<i32>} : memref<1x1x16xf32, #tpu.memory_space<vmem>>, vector<1x1x16xf32>,
    return
  }
  func.func @transform_0(%arg0: i32, %arg1: i32) -> (i32, i32, i32) {
    %c0_i32 = arith.constant 0 : i32
    %c0_i32_0 = arith.constant 0 : i32
    return %arg1, %c0_i32, %arg0 : i32, i32, i32
  }
  func.func @transform_1(%arg0: i32, %arg1: i32) -> (i32, i32) {
    %c0_i32 = arith.constant 0 : i32
    %c0_i32_0 = arith.constant 0 : i32
    return %c0_i32, %arg0 : i32, i32
  }
  func.func @transform_2(%arg0: i32, %arg1: i32) -> (i32, i32) {
    %c0_i32 = arith.constant 0 : i32
    %c0_i32_0 = arith.constant 0 : i32
    return %c0_i32, %arg0 : i32, i32
  }
  func.func @transform_3(%arg0: i32, %arg1: i32) -> (i32, i32, i32) {
    %c0_i32 = arith.constant 0 : i32
    %c0_i32_0 = arith.constant 0 : i32
    return %arg1, %c0_i32, %arg0 : i32, i32, i32
  }
  func.func @transform_4(%arg0: i32, %arg1: i32) -> (i32, i32, i32) {
    %c0_i32 = arith.constant 0 : i32
    %c0_i32_0 = arith.constant 0 : i32
    return %arg1, %c0_i32, %arg0 : i32, i32, i32
  }
  func.func @transform_5(%arg0: i32, %arg1: i32) -> (i32, i32, i32) {
    %c0_i32 = arith.constant 0 : i32
    %c0_i32_0 = arith.constant 0 : i32
    return %arg1, %c0_i32, %arg0 : i32, i32, i32
  }
}

</mosaic_0001>

<llo_original>
// kernel: tpu_custom_call.1
$region0: #{tpu_custom_call.1}
  #allocation0 [shape = 'u32[]', space=smem, size = 0x4, offset = 0x4, fixed_abs, tag = 'smem constant byte address 0x4 - core index']
  #allocation1 [shape = 'u32[144,128]{1,0:T(1,128)}', space=vmem, size = 0x12000, scoped, tag = 'internal scratch']
  %s0 = inlined_call_operand.hbm [shape: f32[2,1,128], index: 0, kind: input, shape index: {}]
  %s1 = inlined_call_operand.vmem [shape: f32[1,128], index: 1, kind: input, shape index: {}]
  %s2 = inlined_call_operand.vmem [shape: f32[1,128], index: 2, kind: input, shape index: {}]
  %s3 = inlined_call_operand.hbm [shape: f32[2,1,128], index: 3, kind: output, shape index: {0}]
  %s4 = inlined_call_operand.hbm [shape: f32[2,1,16], index: 4, kind: output, shape index: {1}]
  %s5 = inlined_call_operand.hbm [shape: f32[2,1,16], index: 5, kind: output, shape index: {2}]
  %6 = xla_tuple %s3, %s4, %s5
  %s7 = sld [smem:[#allocation0]]
  $region65: #{tpu_custom_call.1} parent=0
    _
  %s9 = ssub.s32 1, %s7
  %s10 = scalar_select 0, %s9, %s7
  $region1: #{tpu_custom_call.1} parent=0
    #allocation2 [shape = 'u8[1024]{0}', space=vmem, size = 0x400, scoped, tag = 'input window, operand 0']
    #allocation3 [shape = 's32[2]{0}', space=sflag, size = 0x8, scoped, tag = 'scoped memory for tpu_custom_call.1']
    #allocation4 [shape = 's32[2]{0}', space=sflag, size = 0x8, scoped, tag = 'scoped memory for tpu_custom_call.1']
    #allocation5 [shape = 'u8[1024]{0}', space=vmem, size = 0x400, scoped, tag = 'output window, operand 0']
    #allocation6 [shape = 'u8[1024]{0}', space=vmem, size = 0x400, scoped, tag = 'output window, operand 1']
    #allocation7 [shape = 's32[2]{0}', space=sflag, size = 0x8, scoped, tag = 'scoped memory for tpu_custom_call.1']
    #allocation8 [shape = 'u8[1024]{0}', space=vmem, size = 0x400, scoped, tag = 'output window, operand 2']
    %11 = vsyncpa [#allocation3], 0
    %s12 = scalar_lea.sflag [#allocation3], 1
    %13 = vsyncpa %s12, 0
    %14 = vsyncpa [#allocation4], 0
    %s15 = scalar_lea.sflag [#allocation4], 1
    %16 = vsyncpa %s15, 0
    %17 = vsyncpa [#allocation7], 0
    %s18 = scalar_lea.sflag [#allocation7], 1
    %19 = vsyncpa %s18, 0
    loop: start=0, step=1, limit=4
    $region2: #{tpu_custom_call.1} parent=1 // loop_pre_header
      _
    $region3: #{tpu_custom_call.1} parent=1 // loop_header
      %s21 = sphi 0, %s25
      %p22 = scmp.ge.s32.totalorder %s21, 4
      %s28 = sphi 0, %s40
      %s29 = sphi 0, %s36
      %s30 = sphi 0, %s28
      %s31 = sphi 0, %s29
      %s32 = sphi 0, %s30
      %s33 = sphi 0, %s31
      %s45 = sphi 0, %s47
      %s48 = sphi 0, %s45
      %s49 = sphi 0, %s48
      %s65 = sphi 0, %s49
      %s71 = sphi 0, %s73
      %s74 = sphi 0, %s71
      %s75 = sphi 0, %s74
      %s91 = sphi 0, %s75
      %s97 = sphi 0, %s99
      %s100 = sphi 0, %s97
      %s101 = sphi 0, %s100
      %s117 = sphi 0, %s101
      %s125 = sphi 0, %s127
      %s128 = sphi 0, %s125
      %s129 = sphi 0, %s128
      %s145 = sphi 0, %s129
      %s153 = sphi 0, %s155
      %s156 = sphi 0, %s153
      %s157 = sphi 0, %s156
      %s173 = sphi 0, %s157
      %s181 = sphi 0, %s183
      %s184 = sphi 0, %s181
      %s185 = sphi 0, %s184
      %s201 = sphi 0, %s185
    $region4: #{tpu_custom_call.1} parent=1 // loop_header_branch
      %24 = sbr.rel (%p22) target = $region8
    $region5: #{tpu_custom_call.1} parent=1 // loop_body
      %s26 = ssub.s32 %s21, 1
      %s27 = ssub.s32 %s21, 2
      %s34 = sadd.s32 1, %s29
      %p35 = scmp.ge.s32.totalorder %s34, 2
      %s36 = scalar_select %p35, 0, %s34
      %s37 = sadd.s32 1, %s28
      %s38 = scalar_select %p35, %s37, %s28
      %p39 = scmp.ge.s32.totalorder %s38, 1
      %s40 = scalar_select %p39, 0, %s38
      %s41 = ssub.s32 %s29, %s36
      %s42 = ssub.s32 %s28, %s40
      %s43 = sor.u32 %s41, %s42
      %p44 = scmp.eq.s32.totalorder %s43, 0
      %s46 = sadd.s32 %s45, 1
      %s47 = scalar_select %p44, %s45, %s46
      %p50 = pneg %p44
      %p51 = scmp.eq.s32.totalorder %s21, 1
      %p52 = por %p50, %p51
      %p53 = scmp.ne.s32.totalorder %s45, %s48
      %p54 = scmp.eq.s32.totalorder %s21, 0
      %p55 = por %p53, %p54
      %p56 = scmp.ne.s32.totalorder %s45, %s48
      %p57 = scmp.eq.s32.totalorder %s26, 1
      %p58 = por %p56, %p57
      %p59 = scmp.ne.s32.totalorder %s48, %s49
      %p60 = scmp.eq.s32.totalorder %s26, 0
      %p61 = por %p59, %p60
      %p62 = scmp.ne.s32.totalorder %s48, %s49
      %p63 = scmp.eq.s32.totalorder %s27, 1
      %p64 = por %p62, %p63
      %p66 = scmp.ne.s32.totalorder %s49, %s65
      %p67 = scmp.eq.s32.totalorder %s27, 0
      %p68 = por %p66, %p67
      %s69 = ssub.s32 %s28, %s40
      %p70 = scmp.eq.s32.totalorder %s69, 0
      %s72 = sadd.s32 %s71, 1
      %s73 = scalar_select %p70, %s71, %s72
      %p76 = pneg %p70
      %p77 = scmp.eq.s32.totalorder %s21, 1
      %p78 = por %p76, %p77
      %p79 = scmp.ne.s32.totalorder %s71, %s74
      %p80 = scmp.eq.s32.totalorder %s21, 0
      %p81 = por %p79, %p80
      %p82 = scmp.ne.s32.totalorder %s71, %s74
      %p83 = scmp.eq.s32.totalorder %s26, 1
      %p84 = por %p82, %p83
      %p85 = scmp.ne.s32.totalorder %s74, %s75
      %p86 = scmp.eq.s32.totalorder %s26, 0
      %p87 = por %p85, %p86
      %p88 = scmp.ne.s32.totalorder %s74, %s75
      %p89 = scmp.eq.s32.totalorder %s27, 1
      %p90 = por %p88, %p89
      %p92 = scmp.ne.s32.totalorder %s75, %s91
      %p93 = scmp.eq.s32.totalorder %s27, 0
      %p94 = por %p92, %p93
      %s95 = ssub.s32 %s28, %s40
      %p96 = scmp.eq.s32.totalorder %s95, 0
      %s98 = sadd.s32 %s97, 1
      %s99 = scalar_select %p96, %s97, %s98
      %p102 = pneg %p96
      %p103 = scmp.eq.s32.totalorder %s21, 1
      %p104 = por %p102, %p103
      %p105 = scmp.ne.s32.totalorder %s97, %s100
      %p106 = scmp.eq.s32.totalorder %s21, 0
      %p107 = por %p105, %p106
      %p108 = scmp.ne.s32.totalorder %s97, %s100
      %p109 = scmp.eq.s32.totalorder %s26, 1
      %p110 = por %p108, %p109
      %p111 = scmp.ne.s32.totalorder %s100, %s101
      %p112 = scmp.eq.s32.totalorder %s26, 0
      %p113 = por %p111, %p112
      %p114 = scmp.ne.s32.totalorder %s100, %s101
      %p115 = scmp.eq.s32.totalorder %s27, 1
      %p116 = por %p114, %p115
      %p118 = scmp.ne.s32.totalorder %s101, %s117
      %p119 = scmp.eq.s32.totalorder %s27, 0
      %p120 = por %p118, %p119
      %s121 = ssub.s32 %s29, %s36
      %s122 = ssub.s32 %s28, %s40
      %s123 = sor.u32 %s121, %s122
      %p124 = scmp.eq.s32.totalorder %s123, 0
      %s126 = sadd.s32 %s125, 1
      %s127 = scalar_select %p124, %s125, %s126
      %p130 = pneg %p124
      %p131 = scmp.eq.s32.totalorder %s21, 1
      %p132 = por %p130, %p131
      %p133 = scmp.ne.s32.totalorder %s125, %s128
      %p134 = scmp.eq.s32.totalorder %s21, 0
      %p135 = por %p133, %p134
      %p136 = scmp.ne.s32.totalorder %s125, %s128
      %p137 = scmp.eq.s32.totalorder %s26, 1
      %p138 = por %p136, %p137
      %p139 = scmp.ne.s32.totalorder %s128, %s129
      %p140 = scmp.eq.s32.totalorder %s26, 0
      %p141 = por %p139, %p140
      %p142 = scmp.ne.s32.totalorder %s128, %s129
      %p143 = scmp.eq.s32.totalorder %s27, 1
      %p144 = por %p142, %p143
      %p146 = scmp.ne.s32.totalorder %s129, %s145
      %p147 = scmp.eq.s32.totalorder %s27, 0
      %p148 = por %p146, %p147
      %s149 = ssub.s32 %s29, %s36
      %s150 = ssub.s32 %s28, %s40
      %s151 = sor.u32 %s149, %s150
      %p152 = scmp.eq.s32.totalorder %s151, 0
      %s154 = sadd.s32 %s153, 1
      %s155 = scalar_select %p152, %s153, %s154
      %p158 = pneg %p152
      %p159 = scmp.eq.s32.totalorder %s21, 1
      %p160 = por %p158, %p159
      %p161 = scmp.ne.s32.totalorder %s153, %s156
      %p162 = scmp.eq.s32.totalorder %s21, 0
      %p163 = por %p161, %p162
      %p164 = scmp.ne.s32.totalorder %s153, %s156
      %p165 = scmp.eq.s32.totalorder %s26, 1
      %p166 = por %p164, %p165
      %p167 = scmp.ne.s32.totalorder %s156, %s157
      %p168 = scmp.eq.s32.totalorder %s26, 0
      %p169 = por %p167, %p168
      %p170 = scmp.ne.s32.totalorder %s156, %s157
      %p171 = scmp.eq.s32.totalorder %s27, 1
      %p172 = por %p170, %p171
      %p174 = scmp.ne.s32.totalorder %s157, %s173
      %p175 = scmp.eq.s32.totalorder %s27, 0
      %p176 = por %p174, %p175
      %s177 = ssub.s32 %s29, %s36
      %s178 = ssub.s32 %s28, %s40
      %s179 = sor.u32 %s177, %s178
      %p180 = scmp.eq.s32.totalorder %s179, 0
      %s182 = sadd.s32 %s181, 1
      %s183 = scalar_select %p180, %s181, %s182
      %p186 = pneg %p180
      %p187 = scmp.eq.s32.totalorder %s21, 1
      %p188 = por %p186, %p187
      %p189 = scmp.ne.s32.totalorder %s181, %s184
      %p190 = scmp.eq.s32.totalorder %s21, 0
      %p191 = por %p189, %p190
      %p192 = scmp.ne.s32.totalorder %s181, %s184
      %p193 = scmp.eq.s32.totalorder %s26, 1
      %p194 = por %p192, %p193
      %p195 = scmp.ne.s32.totalorder %s184, %s185
      %p196 = scmp.eq.s32.totalorder %s26, 0
      %p197 = por %p195, %p196
      %p198 = scmp.ne.s32.totalorder %s184, %s185
      %p199 = scmp.eq.s32.totalorder %s27, 1
      %p200 = por %p198, %p199
      %p202 = scmp.ne.s32.totalorder %s185, %s201
      %p203 = scmp.eq.s32.totalorder %s27, 0
      %p204 = por %p202, %p203
      %p205 = scmp.le.s32.totalorder 1, %s21
      %p206 = scmp.lt.s32.totalorder %s21, 3
      %p207 = pnand %p205, %p206
      %p208 = pneg %p207
      // Predicated region
      $region9: #{tpu_custom_call.1} parent=5 // pred_check
        _
      $region10: #{tpu_custom_call.1} parent=5 // pred_check_branch
        %210 = sbr.rel (%p207) target = $region12
      $region11: #{tpu_custom_call.1} parent=5 // pred_region
        %s211 = ssub.s32 %s21, 1
        // Predicated region
        $region13: #{tpu_custom_call.1} parent=11 // pred_check
          %p212 = pneg %p87
        $region14: #{tpu_custom_call.1} parent=11 // pred_check_branch
          %214 = sbr.rel (%p212) target = $region16
        $region15: #{tpu_custom_call.1} parent=11 // pred_region
          %p215 = scmp.lt.s32.totalorder %s30, 0
          %s216 = scalar_select %p215, %s30, 0
          %s217 = scalar_lea.vmem %s1, %s216
        $region16: #{tpu_custom_call.1} parent=11 // pred_fallthru
          _
        // Predicated region
        $region17: #{tpu_custom_call.1} parent=11 // pred_check
          %p218 = pneg %p113
        $region18: #{tpu_custom_call.1} parent=11 // pred_check_branch
          %220 = sbr.rel (%p218) target = $region20
        $region19: #{tpu_custom_call.1} parent=11 // pred_region
          %p221 = scmp.lt.s32.totalorder %s30, 0
          %s222 = scalar_select %p221, %s30, 0
          %s223 = scalar_lea.vmem %s2, %s222
        $region20: #{tpu_custom_call.1} parent=11 // pred_fallthru
          _
      $region12: #{tpu_custom_call.1} parent=5 // pred_fallthru
        _
      %p224 = scmp.lt.s32.totalorder %s21, 2
      // Predicated region
      $region21: #{tpu_custom_call.1} parent=5 // pred_check
        %p225 = pneg %p224
      $region22: #{tpu_custom_call.1} parent=5 // pred_check_branch
        %227 = sbr.rel (%p225) target = $region24
      $region23: #{tpu_custom_call.1} parent=5 // pred_region
        // Predicated region
        $region25: #{tpu_custom_call.1} parent=23 // pred_check
          %p228 = pneg %p55
        $region26: #{tpu_custom_call.1} parent=23 // pred_check_branch
          %230 = sbr.rel (%p228) target = $region28
        $region27: #{tpu_custom_call.1} parent=23 // pred_region
          %s231 = sand.u32 %s45, 1
          %s232 = scalar_lea.sflag [#allocation3], %s231
          %s233 = sand.u32 %s45, 1
          %s234 = scalar_lea.vmem [#allocation2], %s233
          %s236 = ssub.s32 16, 16
          %237 = vsyncadd %s232, %s236
          %s238 = sadd.s32 %s28, %s29
          %s239 = smul.addr %s238, 16
          %s240 = scalar_lea.hbm %s0, %s239
          %s242 = sshll.u32 %s234, 4
          %s243 = int_to_ptr.vmem [resolvable:$true] %s242
          %245 = dma.hbm_to_vmem [thread:$0]  %s240, 16, %s243, %s232
        $region28: #{tpu_custom_call.1} parent=23 // pred_fallthru
          _
      $region24: #{tpu_custom_call.1} parent=5 // pred_fallthru
        _
      %p246 = scmp.le.s32.totalorder 1, %s21
      %p247 = scmp.lt.s32.totalorder %s21, 3
      %p248 = pnand %p246, %p247
      %p249 = pneg %p248
      // Predicated region
      $region29: #{tpu_custom_call.1} parent=5 // pred_check
        _
      $region30: #{tpu_custom_call.1} parent=5 // pred_check_branch
        %251 = sbr.rel (%p248) target = $region32
      $region31: #{tpu_custom_call.1} parent=5 // pred_region
        %s252 = ssub.s32 %s21, 1
        %s253 = sand.u32 %s48, 1
        %s254 = scalar_lea.sflag [#allocation3], %s253
        %s255 = sand.u32 %s48, 1
        %s256 = scalar_lea.vmem [#allocation2], %s255
        // Predicated region
        $region33: #{tpu_custom_call.1} parent=31 // pred_check
          %p257 = pneg %p61
        $region34: #{tpu_custom_call.1} parent=31 // pred_check_branch
          %259 = sbr.rel (%p257) target = $region36
        $region35: #{tpu_custom_call.1} parent=31 // pred_region
          %260 = dma.done %s254, 16
        $region36: #{tpu_custom_call.1} parent=31 // pred_fallthru
          _
        %s261 = sand.u32 %s48, 1
        %s262 = scalar_lea.sflag [#allocation3], %s261
        %s263 = sand.u32 %s48, 1
        %s264 = scalar_lea.vmem [#allocation2], %s263
        %p265 = pneg %p61
        %p266 = pneg %p58
        %p267 = scmp.lt.s32.totalorder %s30, 0
        %s268 = scalar_select %p267, %s30, 0
        %s269 = scalar_lea.vmem %s1, %s268
        %p270 = pneg %p87
        %p271 = pneg %p84
        %p272 = scmp.lt.s32.totalorder %s30, 0
        %s273 = scalar_select %p272, %s30, 0
        %s274 = scalar_lea.vmem %s2, %s273
        %p275 = pneg %p113
        %p276 = pneg %p110
        %p277 = pneg %p141
        %p278 = pneg %p138
        %s279 = sand.u32 %s128, 1
        %s280 = scalar_lea.sflag [#allocation4], %s279
        %s281 = sand.u32 %s128, 1
        %s282 = scalar_lea.vmem [#allocation5], %s281
        %p283 = pneg %p169
        %p284 = pneg %p166
        %s285 = sand.u32 %s26, 1
        %s286 = scalar_lea.sflag [#allocation7], %s285
        %s287 = sand.u32 %s156, 1
        %s288 = scalar_lea.vmem [#allocation6], %s287
        %p289 = pneg %p197
        %p290 = pneg %p194
        %s291 = sand.u32 %s26, 1
        %s292 = scalar_lea.sflag [#allocation7], %s291
        %s293 = sand.u32 %s184, 1
        %s294 = scalar_lea.vmem [#allocation8], %s293
        %p295 = scmp.lt.s32.totalorder %s30, 0
        %s296 = scalar_select %p295, %s30, 0
        %s297 = scalar_lea.vmem %s1, %s296
        %p298 = scmp.lt.s32.totalorder %s30, 0
        %s299 = scalar_select %p298, %s30, 0
        %s300 = scalar_lea.vmem %s2, %s299
        %v301 = vld [vmem:[%s256] sm:$0x1]
        %v302 = vadd.f32 %v301, 0.0
        %304 = vrot.lane.b32.xlu0 %v302, 112
        %v305 = vpop.permute.xlu0 %304
        %v307 = vadd.f32 %v302, %v305
        %308 = vrot.lane.b32.xlu0 %v302, 96
        %v309 = vpop.permute.xlu0 %308
        %v311 = vadd.f32 %v307, %v309
        %312 = vrot.lane.b32.xlu0 %v302, 80
        %v313 = vpop.permute.xlu0 %312
        %v315 = vadd.f32 %v311, %v313
        %316 = vrot.lane.b32.xlu0 %v302, 64
        %v317 = vpop.permute.xlu0 %316
        %v319 = vadd.f32 %v315, %v317
        %320 = vrot.lane.b32.xlu0 %v302, 48
        %v321 = vpop.permute.xlu0 %320
        %v323 = vadd.f32 %v319, %v321
        %324 = vrot.lane.b32.xlu0 %v302, 32
        %v325 = vpop.permute.xlu0 %324
        %v327 = vadd.f32 %v323, %v325
        %328 = vrot.lane.b32.xlu0 %v302, 16
        %v329 = vpop.permute.xlu0 %328
        %v331 = vadd.f32 %v327, %v329
        %v332 = vmul.f32 %v331, 0.125
        %v334 = vlaneseq
        %v335 = vshrl.u32 %v334, 7
        %v336 = vsub.s32 0, %v335
        %v337 = vrot.slane %v332, %v336
        %338 = vrot.lane.b32.xlu0 %v337, 16
        %v339 = vpop.permute.xlu0 %338
        %341 = vrot.lane.b32.xlu0 %v337, 32
        %v342 = vpop.permute.xlu0 %341
        %344 = vrot.lane.b32.xlu0 %v337, 48
        %v345 = vpop.permute.xlu0 %344
        %347 = vrot.lane.b32.xlu0 %v337, 64
        %v348 = vpop.permute.xlu0 %347
        %350 = vrot.lane.b32.xlu0 %v337, 80
        %v351 = vpop.permute.xlu0 %350
        %353 = vrot.lane.b32.xlu0 %v337, 96
        %v354 = vpop.permute.xlu0 %353
        %356 = vrot.lane.b32.xlu0 %v337, 112
        %v357 = vpop.permute.xlu0 %356
        %vm359 = vcmask 130048
        %v360 = vsel %vm359, %v332, %v339
        %vm361 = vcmask 261120
        %v362 = vsel %vm361, %v360, %v342
        %vm363 = vcmask 392192
        %v364 = vsel %vm363, %v362, %v345
        %vm365 = vcmask 523264
        %v366 = vsel %vm365, %v364, %v348
        %vm367 = vcmask 654336
        %v368 = vsel %vm367, %v366, %v351
        %vm369 = vcmask 785408
        %v370 = vsel %vm369, %v368, %v354
        %vm371 = vcmask 916480
        %v372 = vsel %vm371, %v370, %v357
        %v373 = vsub.f32 %v301, %v372
        %v374 = vmul.f32 %v373, %v373
        %v375 = vadd.f32 %v374, 0.0
        %377 = vrot.lane.b32.xlu0 %v375, 112
        %v378 = vpop.permute.xlu0 %377
        %v380 = vadd.f32 %v375, %v378
        %381 = vrot.lane.b32.xlu0 %v375, 96
        %v382 = vpop.permute.xlu0 %381
        %v384 = vadd.f32 %v380, %v382
        %385 = vrot.lane.b32.xlu0 %v375, 80
        %v386 = vpop.permute.xlu0 %385
        %v388 = vadd.f32 %v384, %v386
        %389 = vrot.lane.b32.xlu0 %v375, 64
        %v390 = vpop.permute.xlu0 %389
        %v392 = vadd.f32 %v388, %v390
        %393 = vrot.lane.b32.xlu0 %v375, 48
        %v394 = vpop.permute.xlu0 %393
        %v396 = vadd.f32 %v392, %v394
        %397 = vrot.lane.b32.xlu0 %v375, 32
        %v398 = vpop.permute.xlu0 %397
        %v400 = vadd.f32 %v396, %v398
        %401 = vrot.lane.b32.xlu0 %v375, 16
        %v402 = vpop.permute.xlu0 %401
        %v404 = vadd.f32 %v400, %v402
        %v405 = vmul.f32 %v404, 0.125
        %v406 = vadd.f32 %v405, 1e-05
        %v407 = vrsqrt.pop %v406
        %v408 = vmul.f32 %v406, %v407
        %vm409 = vcmp.eq.f32.partialorder %v406, inf
        %v410 = vsel %vm409, %v406, %v408
        %vm411 = vcmp.eq.f32.partialorder %v406, 0.0
        %v412 = vand.u32 %v406, 2147483648
        %v413 = vsel %vm411, %v412, %v410
        %v414 = vrcp.pop %v413
        %v415 = vmul.f32 1.0, %v414
        %v416 = vld [vmem:[%s297] sm:$0x1]
        %v417 = vld [vmem:[%s300] sm:$0x1]
        %v419 = vlaneseq
        %v420 = vshrl.u32 %v419, 7
        %v421 = vsub.s32 0, %v420
        %v422 = vrot.slane %v415, %v421
        %423 = vrot.lane.b32.xlu0 %v422, 16
        %v424 = vpop.permute.xlu0 %423
        %426 = vrot.lane.b32.xlu0 %v422, 32
        %v427 = vpop.permute.xlu0 %426
        %429 = vrot.lane.b32.xlu0 %v422, 48
        %v430 = vpop.permute.xlu0 %429
        %432 = vrot.lane.b32.xlu0 %v422, 64
        %v433 = vpop.permute.xlu0 %432
        %435 = vrot.lane.b32.xlu0 %v422, 80
        %v436 = vpop.permute.xlu0 %435
        %438 = vrot.lane.b32.xlu0 %v422, 96
        %v439 = vpop.permute.xlu0 %438
        %441 = vrot.lane.b32.xlu0 %v422, 112
        %v442 = vpop.permute.xlu0 %441
        %v444 = vsel %vm359, %v415, %v424
        %v445 = vsel %vm361, %v444, %v427
        %v446 = vsel %vm363, %v445, %v430
        %v447 = vsel %vm365, %v446, %v433
        %v448 = vsel %vm367, %v447, %v436
        %v449 = vsel %vm369, %v448, %v439
        %v450 = vsel %vm371, %v449, %v442
        %v451 = vmul.f32 %v416, %v450
        %v452 = vmul.f32 %v372, %v451
        %v453 = vsub.f32 %v417, %v452
        %v454 = vmul.f32 %v301, %v451
        %v455 = vadd.f32 %v454, %v453
        %456 = vst [vmem:[%s282] sm:$0x1] %v455
        %vm457 = vcmask 122880
        %458 = vst.msk [vmem:[%s288] sm:$0x1] %vm457, %v332
        %459 = vst.msk [vmem:[%s294] sm:$0x1] %vm457, %v413
        %s460 = sand.u32 %s128, 1
        %s461 = scalar_lea.sflag [#allocation4], %s460
        %s462 = sand.u32 %s128, 1
        %s463 = scalar_lea.vmem [#allocation5], %s462
        %s464 = sand.u32 %s26, 1
        %s465 = scalar_lea.sflag [#allocation7], %s464
        %s466 = sand.u32 %s156, 1
        %s467 = scalar_lea.vmem [#allocation6], %s466
        %s468 = sand.u32 %s26, 1
        %s469 = scalar_lea.sflag [#allocation7], %s468
        %s470 = sand.u32 %s184, 1
        %s471 = scalar_lea.vmem [#allocation8], %s470
        // Predicated region
        $region37: #{tpu_custom_call.1} parent=31 // pred_check
          %p472 = pneg %p138
        $region38: #{tpu_custom_call.1} parent=31 // pred_check_branch
          %474 = sbr.rel (%p472) target = $region40
        $region39: #{tpu_custom_call.1} parent=31 // pred_region
          %s476 = ssub.s32 16, 16
          %477 = vsyncadd %s461, %s476
          %s478 = sadd.s32 %s30, %s31
          %s479 = smul.addr %s478, 16
          %s480 = scalar_lea.hbm %s3, %s479
          %s482 = sshll.u32 %s463, 4
          %s483 = int_to_ptr.vmem [resolvable:$true] %s482
          %485 = dma.vmem_to_hbm [thread:$0]  %s483, 16, %s480, %s461
        $region40: #{tpu_custom_call.1} parent=31 // pred_fallthru
          _
        // Predicated region
        $region41: #{tpu_custom_call.1} parent=31 // pred_check
          %p486 = pneg %p166
        $region42: #{tpu_custom_call.1} parent=31 // pred_check_branch
          %488 = sbr.rel (%p486) target = $region44
        $region43: #{tpu_custom_call.1} parent=31 // pred_region
          %s490 = ssub.s32 16, 16
          %491 = vsyncadd %s465, %s490
          %s492 = sadd.s32 %s30, %s31
          %s493 = smul.addr %s492, 16
          %s494 = scalar_lea.hbm %s4, %s493
          %s496 = sshll.u32 %s467, 4
          %s497 = int_to_ptr.vmem [resolvable:$true] %s496
          %499 = dma.vmem_to_hbm [thread:$0]  %s497, 16, %s494, %s465
        $region44: #{tpu_custom_call.1} parent=31 // pred_fallthru
          _
        // Predicated region
        $region45: #{tpu_custom_call.1} parent=31 // pred_check
          %p500 = pneg %p194
        $region46: #{tpu_custom_call.1} parent=31 // pred_check_branch
          %502 = sbr.rel (%p500) target = $region48
        $region47: #{tpu_custom_call.1} parent=31 // pred_region
          %s504 = ssub.s32 16, 16
          %505 = vsyncadd %s469, %s504
          %s506 = sadd.s32 %s30, %s31
          %s507 = smul.addr %s506, 16
          %s508 = scalar_lea.hbm %s5, %s507
          %s510 = sshll.u32 %s471, 4
          %s511 = int_to_ptr.vmem [resolvable:$true] %s510
          %513 = dma.vmem_to_hbm [thread:$0]  %s511, 16, %s508, %s469
        $region48: #{tpu_custom_call.1} parent=31 // pred_fallthru
          _
      $region32: #{tpu_custom_call.1} parent=5 // pred_fallthru
        _
      %p514 = scmp.le.s32.totalorder 2, %s21
      // Predicated region
      $region49: #{tpu_custom_call.1} parent=5 // pred_check
        %p515 = pneg %p514
      $region50: #{tpu_custom_call.1} parent=5 // pred_check_branch
        %517 = sbr.rel (%p515) target = $region52
      $region51: #{tpu_custom_call.1} parent=5 // pred_region
        %s518 = ssub.s32 %s21, 2
        // Predicated region
        $region53: #{tpu_custom_call.1} parent=51 // pred_check
          %p519 = pneg %p144
        $region54: #{tpu_custom_call.1} parent=51 // pred_check_branch
          %521 = sbr.rel (%p519) target = $region56
        $region55: #{tpu_custom_call.1} parent=51 // pred_region
          %s522 = sand.u32 %s129, 1
          %s523 = scalar_lea.sflag [#allocation4], %s522
          %s524 = sand.u32 %s129, 1
          %s525 = scalar_lea.vmem [#allocation5], %s524
          %526 = dma.done %s523, 16
        $region56: #{tpu_custom_call.1} parent=51 // pred_fallthru
          _
        // Predicated region
        $region57: #{tpu_custom_call.1} parent=51 // pred_check
          %p527 = pneg %p172
        $region58: #{tpu_custom_call.1} parent=51 // pred_check_branch
          %529 = sbr.rel (%p527) target = $region60
        $region59: #{tpu_custom_call.1} parent=51 // pred_region
          %s530 = sand.u32 %s27, 1
          %s531 = scalar_lea.sflag [#allocation7], %s530
          %s532 = sand.u32 %s157, 1
          %s533 = scalar_lea.vmem [#allocation6], %s532
          %534 = dma.done %s531, 16
        $region60: #{tpu_custom_call.1} parent=51 // pred_fallthru
          _
        // Predicated region
        $region61: #{tpu_custom_call.1} parent=51 // pred_check
          %p535 = pneg %p200
        $region62: #{tpu_custom_call.1} parent=51 // pred_check_branch
          %537 = sbr.rel (%p535) target = $region64
        $region63: #{tpu_custom_call.1} parent=51 // pred_region
          %s538 = sand.u32 %s27, 1
          %s539 = scalar_lea.sflag [#allocation7], %s538
          %s540 = sand.u32 %s185, 1
          %s541 = scalar_lea.vmem [#allocation8], %s540
          %542 = dma.done %s539, 16
        $region64: #{tpu_custom_call.1} parent=51 // pred_fallthru
          _
      $region52: #{tpu_custom_call.1} parent=5 // pred_fallthru
        _
    $region6: #{tpu_custom_call.1} parent=1 // loop_footer
      %s25 = sadd.s32 1, %s21
    $region7: #{tpu_custom_call.1} parent=1 // loop_footer_branch
      %20 = sbr.rel target = $region3
    $region8: #{tpu_custom_call.1} parent=1 // loop_exit
      _
    %543 = vsyncpa [#allocation3], 1
    %s544 = scalar_lea.sflag [#allocation3], 1
    %545 = vsyncpa %s544, 1
    %546 = vsyncpa [#allocation4], 1
    %s547 = scalar_lea.sflag [#allocation4], 1
    %548 = vsyncpa %s547, 1
    %549 = vsyncpa [#allocation7], 1
    %s550 = scalar_lea.sflag [#allocation7], 1
    %551 = vsyncpa %s550, 1

</llo_original>
